<compile_context>
chip_gen: v5e
topology: v5e:2x2
jax: 0.10.0
libtpu: 0.0.40
codegen_flags: <defaults>
</compile_context>

<pallas_src>
import jax
import jax.numpy as jnp
from jax.experimental import pallas as pl
from jax.experimental.pallas import tpu as pltpu
import numpy as np

LATENT_FEATURES = 5
LAYERS_FACTOR = 8
OUT_FEATURES = 10
# coder_layers = [4f, 2f, 1f] reversed -> [1f, 2f, 4f]
DIMS = [LATENT_FEATURES,
        1 * LAYERS_FACTOR,
        2 * LAYERS_FACTOR,
        4 * LAYERS_FACTOR,
        OUT_FEATURES]            # 5 -> 8 -> 16 -> 32 -> 10

LANE = 128
SUBLANE = 8

# Batch tile (lanes).  Each (feat, tb) f32 buffer is at most 32*tb*4 B = 1 MiB
# at tb=8192, so double-buffered x/out tiles + intermediates stay far below the
# default scoped VMEM on v5e (16 MiB), v6e (32 MiB) and v7x (32 MiB).
TB_MAX = 8192

# ---- packed parameter slab layout -------------------------------------------
# Row band for layer l holds its (out_f, in_f) weight in columns [0:in_f] and
# its bias in column BIAS_COL.  Row-band starts are multiples of 8 (out dims
# are 8/16/32/10), so in-kernel static slices are sublane-aligned.
_ROW_OFF = [int(o) for o in np.cumsum([0] + DIMS[1:-1])]       # [0, 8, 24, 56]
_TOTAL_ROWS = sum(DIMS[1:])                                     # 66
BIAS_COL = max(DIMS[:-1])                                       # 32
P_COLS = BIAS_COL + 1                                           # 33
P_ROWS = ((_TOTAL_ROWS + SUBLANE - 1) // SUBLANE) * SUBLANE     # 72


def _round_up(n, m):
    return ((n + m - 1) // m) * m


def decoder_kernel(x_ref, p_ref, o_ref):
    """Fused 4-layer MLP on one feature-major batch tile: (ReLU x 3) then Tanh.

    x_ref: (5, tb)   -- batch on the lane axis (lane-dense loads)
    p_ref: (72, 33)  -- packed weights/biases, resident (constant index_map)
    o_ref: (10, tb)  -- lane-dense stores (no masked vst.msk)
    """
    p = p_ref[...]
    h = x_ref[...]
    for li in range(4):
        r0 = _ROW_OFF[li]
        fi, fo = DIMS[li], DIMS[li + 1]
        w = p[r0:r0 + fo, 0:fi]                    # (out, in)
        b = p[r0:r0 + fo, BIAS_COL:BIAS_COL + 1]   # (out, 1), lane-broadcast
        h = jnp.dot(w, h, preferred_element_type=jnp.float32) + b
        h = jnp.maximum(h, 0.0) if li < 3 else jnp.tanh(h)
    o_ref[...] = h


def init_params(key):
    """Deterministic init mimicking torch.nn.Linear default U[-1/sqrt(fan_in), +].

    Returns a single packed (P_ROWS, P_COLS) f32 slab in exactly the layout the
    kernel consumes -> one resident DMA, zero per-call padding/reshaping.
    """
    slab = np.zeros((P_ROWS, P_COLS), np.float32)
    for li in range(4):
        fan_in, fan_out = DIMS[li], DIMS[li + 1]
        key, kw, kb = jax.random.split(key, 3)
        bound = 1.0 / np.sqrt(fan_in)
        w = jax.random.uniform(kw, (fan_out, fan_in), jnp.float32, -bound, bound)
        b = jax.random.uniform(kb, (fan_out,), jnp.float32, -bound, bound)
        r0 = _ROW_OFF[li]
        slab[r0:r0 + fan_out, 0:fan_in] = np.asarray(w)
        slab[r0:r0 + fan_out, BIAS_COL] = np.asarray(b)
    return jnp.asarray(slab)


def old_decoder_ref(x, slab):
    """Pure-JAX reference (same math as the PyTorch module, in f32)."""
    h = x.astype(jnp.float32)
    for li in range(4):
        r0 = _ROW_OFF[li]
        fi, fo = DIMS[li], DIMS[li + 1]
        w = slab[r0:r0 + fo, 0:fi]          # (out, in)
        b = slab[r0:r0 + fo, BIAS_COL]      # (out,)
        h = h @ w.T + b
        h = jnp.maximum(h, 0.0) if li < 3 else jnp.tanh(h)
    return h


def old_decoder_pallas(x, slab, *, tb_max=TB_MAX):
    """x: (B, LATENT_FEATURES) -> (B, OUT_FEATURES), float32, via Pallas."""
    B = x.shape[0]
    x = x.astype(jnp.float32)

    # Pad batch to a lane multiple (batch lives on the lane axis in-kernel).
    # Padded columns carry zeros/garbage through dot/relu/tanh; every column is
    # independent and sliced off at the end, so this is benign.  Do NOT add
    # cross-column reductions in the kernel without masking these columns.
    B_pad = _round_up(max(B, LANE), LANE)
    if B_pad != B:
        x = jnp.pad(x, ((0, B_pad - B), (0, 0)))
    x_t = x.T                                    # (5, B_pad), feature-major

    tb = min(tb_max, B_pad)
    grid = (pl.cdiv(B_pad, tb),)

    in_specs = [
        # Activations: tiled over the batch (lane) axis, auto double-buffered.
        pl.BlockSpec((DIMS[0], tb), lambda i: (0, i)),
        # Packed params: constant index_map -> DMA'd once, stays resident.
        pl.BlockSpec((P_ROWS, P_COLS), lambda i: (0, 0)),
    ]
    out_spec = pl.BlockSpec((DIMS[-1], tb), lambda i: (0, i))

    # bytes_accessed reflects the (8,128)-tiled HBM layout: (5,B)/(10,B) f32
    # pad their sublane (feature) dim to 8/16; the param slab pads lanes to 128.
    bytes_acc = 4 * (B_pad * (_round_up(DIMS[0], SUBLANE)
                              + _round_up(DIMS[-1], SUBLANE))
                     + P_ROWS * LANE)
    cost = pl.CostEstimate(
        flops=2 * B_pad * sum(DIMS[i] * DIMS[i + 1] for i in range(4)),
        transcendentals=B_pad * DIMS[-1],
        bytes_accessed=bytes_acc,
    )

    out_t = pl.pallas_call(
        decoder_kernel,
        out_shape=jax.ShapeDtypeStruct((DIMS[-1], B_pad), jnp.float32),
        grid_spec=pltpu.PrefetchScalarGridSpec(
            num_scalar_prefetch=0,
            grid=grid,
            in_specs=in_specs,
            out_specs=out_spec,
        ),
        compiler_params=pltpu.CompilerParams(
            # v7x: shard batch tiles across the two TensorCores when grid > 1.
            dimension_semantics=("parallel",),
        ),
        cost_estimate=cost,
    )(x_t, slab)

    return out_t.T[:B]


def old_decoder(x, slab, *, min_pallas_batch=1024, force_pallas=False, tb_max=TB_MAX):
    """Entry point with a small-batch fallback: for tiny B the pallas_call
    launch + pipeline prologue exceeds the whole compute, so XLA's fused path
    wins outright."""
    if not force_pallas and x.shape[0] < min_pallas_batch:
        return old_decoder_ref(x, slab)
    return old_decoder_pallas(x, slab, tb_max=tb_max)


if __name__ == "__main__":
    key = jax.random.PRNGKey(0)
    key, kx, kx2 = jax.random.split(key, 3)
    slab = init_params(key)

    # Small-batch check (B=2): force the Pallas path (single padded tile).
    B = 2
    x = jax.random.normal(kx, (B, LATENT_FEATURES), jnp.float32)
    out = jax.block_until_ready(old_decoder(x, slab, force_pallas=True))
    ref = old_decoder_ref(x, slab)
    np.testing.assert_allclose(np.asarray(out), np.asarray(ref),
                               rtol=1e-5, atol=1e-5)
    assert out.shape == (B, OUT_FEATURES)

    # Larger check (B=4500, tb_max=2048): exercises the batch grid (3 steps),
    # a partial last block and the auto (non-fallback) dispatch.
    B2 = 4500
    x2 = jax.random.normal(kx2, (B2, LATENT_FEATURES), jnp.float32)
    out2 = jax.block_until_ready(old_decoder(x2, slab, tb_max=2048))
    ref2 = old_decoder_ref(x2, slab)
    np.testing.assert_allclose(np.asarray(out2), np.asarray(ref2),
                               rtol=1e-5, atol=1e-5)
    assert out2.shape == (B2, OUT_FEATURES)

    print("KERNEL_OK")
</pallas_src>

<mosaic_0001>
module attributes {stable_mosaic.version = 11 : i64} {
  func.func @decoder_kernel(%arg0: i32, %arg1: memref<5x128xf32, #tpu.memory_space<vmem>>, %arg2: memref<72x33xf32, #tpu.memory_space<vmem>>, %arg3: memref<10x128xf32, #tpu.memory_space<vmem>>) attributes {dimension_semantics = [#tpu.dimension_semantics<parallel>], iteration_bounds = array<i64: 1>, scalar_prefetch = 0 : i64, scratch_operands = 0 : i64, tpu.core_type = #tpu.core_type<tc>, window_params = [{transform_indices = @transform_0, window_bounds = array<i64: 5, 128>}, {pipeline_mode = #tpu.pipeline_mode<synchronous>, transform_indices = @transform_1, window_bounds = array<i64: 72, 33>}, {transform_indices = @transform_2, window_bounds = array<i64: 10, 128>}]} {
    %c0 = arith.constant 0 : index
    %c0_0 = arith.constant 0 : index
    %0 = vector.load %arg2[%c0, %c0_0] : memref<72x33xf32, #tpu.memory_space<vmem>>, vector<72x33xf32>
    %c0_1 = arith.constant 0 : index
    %c0_2 = arith.constant 0 : index
    %1 = vector.load %arg1[%c0_1, %c0_2] : memref<5x128xf32, #tpu.memory_space<vmem>>, vector<5x128xf32>
    %2 = vector.extract_strided_slice %0 {offsets = [0, 0], sizes = [8, 5], strides = [1, 1]} : vector<72x33xf32> to vector<8x5xf32>
    %3 = vector.extract_strided_slice %0 {offsets = [0, 32], sizes = [8, 1], strides = [1, 1]} : vector<72x33xf32> to vector<8x1xf32>
    %cst = arith.constant dense<0.000000e+00> : vector<8x128xf32>
    %4 = tpu.matmul %2, %1, %cst {dimension_numbers = #tpu.dot_dimension_numbers<[1], [0], [0], [1], [0, 0, 1, 1], [], []>} : vector<8x5xf32>, vector<5x128xf32>, vector<8x128xf32> -> vector<8x128xf32>
    %5 = vector.broadcast %3 : vector<8x1xf32> to vector<8x128xf32>
    %6 = arith.addf %4, %5 : vector<8x128xf32>
    %cst_3 = arith.constant 0.000000e+00 : f32
    %7 = vector.broadcast %cst_3 : f32 to vector<8x128xf32>
    %8 = arith.maximumf %6, %7 : vector<8x128xf32>
    %9 = vector.extract_strided_slice %0 {offsets = [8, 0], sizes = [16, 8], strides = [1, 1]} : vector<72x33xf32> to vector<16x8xf32>
    %10 = vector.extract_strided_slice %0 {offsets = [8, 32], sizes = [16, 1], strides = [1, 1]} : vector<72x33xf32> to vector<16x1xf32>
    %cst_4 = arith.constant dense<0.000000e+00> : vector<16x128xf32>
    %11 = tpu.matmul %9, %8, %cst_4 {dimension_numbers = #tpu.dot_dimension_numbers<[1], [0], [0], [1], [0, 0, 1, 1], [], []>} : vector<16x8xf32>, vector<8x128xf32>, vector<16x128xf32> -> vector<16x128xf32>
    %12 = vector.broadcast %10 : vector<16x1xf32> to vector<16x128xf32>
    %13 = arith.addf %11, %12 : vector<16x128xf32>
    %cst_5 = arith.constant 0.000000e+00 : f32
    %14 = vector.broadcast %cst_5 : f32 to vector<16x128xf32>
    %15 = arith.maximumf %13, %14 : vector<16x128xf32>
    %16 = vector.extract_strided_slice %0 {offsets = [24, 0], sizes = [32, 16], strides = [1, 1]} : vector<72x33xf32> to vector<32x16xf32>
    %17 = vector.extract_strided_slice %0 {offsets = [24, 32], sizes = [32, 1], strides = [1, 1]} : vector<72x33xf32> to vector<32x1xf32>
    %cst_6 = arith.constant dense<0.000000e+00> : vector<32x128xf32>
    %18 = tpu.matmul %16, %15, %cst_6 {dimension_numbers = #tpu.dot_dimension_numbers<[1], [0], [0], [1], [0, 0, 1, 1], [], []>} : vector<32x16xf32>, vector<16x128xf32>, vector<32x128xf32> -> vector<32x128xf32>
    %19 = vector.broadcast %17 : vector<32x1xf32> to vector<32x128xf32>
    %20 = arith.addf %18, %19 : vector<32x128xf32>
    %cst_7 = arith.constant 0.000000e+00 : f32
    %21 = vector.broadcast %cst_7 : f32 to vector<32x128xf32>
    %22 = arith.maximumf %20, %21 : vector<32x128xf32>
    %23 = vector.extract_strided_slice %0 {offsets = [56, 0], sizes = [10, 32], strides = [1, 1]} : vector<72x33xf32> to vector<10x32xf32>
    %24 = vector.extract_strided_slice %0 {offsets = [56, 32], sizes = [10, 1], strides = [1, 1]} : vector<72x33xf32> to vector<10x1xf32>
    %cst_8 = arith.constant dense<0.000000e+00> : vector<10x128xf32>
    %25 = tpu.matmul %23, %22, %cst_8 {dimension_numbers = #tpu.dot_dimension_numbers<[1], [0], [0], [1], [0, 0, 1, 1], [], []>} : vector<10x32xf32>, vector<32x128xf32>, vector<10x128xf32> -> vector<10x128xf32>
    %26 = vector.broadcast %24 : vector<10x1xf32> to vector<10x128xf32>
    %27 = arith.addf %25, %26 : vector<10x128xf32>
    %28 = math.tanh %27 : vector<10x128xf32>
    %c0_9 = arith.constant 0 : index
    %c0_10 = arith.constant 0 : index
    %29 = vector.load %arg3[%c0_9, %c0_10] : memref<10x128xf32, #tpu.memory_space<vmem>>, vector<10x128xf32>
    tpu.vector_store %arg3[%c0_9, %c0_10], %28 {strides = array<i32>} : memref<10x128xf32, #tpu.memory_space<vmem>>, vector<10x128xf32>,
    return
  }
  func.func @transform_0(%arg0: i32) -> (i32, i32) {
    %c0_i32 = arith.constant 0 : i32
    %c0_i32_0 = arith.constant 0 : i32
    return %c0_i32, %arg0 : i32, i32
  }
  func.func @transform_1(%arg0: i32) -> (i32, i32) {
    %c0_i32 = arith.constant 0 : i32
    %c0_i32_0 = arith.constant 0 : i32
    %c0_i32_1 = arith.constant 0 : i32
    return %c0_i32, %c0_i32_0 : i32, i32
  }
  func.func @transform_2(%arg0: i32) -> (i32, i32) {
    %c0_i32 = arith.constant 0 : i32
    %c0_i32_0 = arith.constant 0 : i32
    return %c0_i32, %arg0 : i32, i32
  }
}

</mosaic_0001>

<llo_original>
// kernel: tpu_custom_call.1
$region0: #{tpu_custom_call.1}
  #allocation0 [shape = 'u32[]', space=smem, size = 0x4, offset = 0x4, fixed_abs, tag = 'smem constant byte address 0x4 - core index']
  #allocation1 [shape = 'u32[72,128]{1,0:T(1,128)}', space=vmem, size = 0x9000, scoped, tag = 'internal scratch']
  %s0 = inlined_call_operand.vmem [shape: f32[5,128], index: 0, kind: input, shape index: {}]
  %s1 = inlined_call_operand.vmem [shape: f32[72,33], index: 1, kind: input, shape index: {}]
  %s2 = inlined_call_operand.hbm [shape: f32[10,128], index: 2, kind: output, shape index: {}]
  %s3 = sld [smem:[#allocation0]]
  $region18: #{tpu_custom_call.1} parent=0
    _
  %s5 = ssub.s32 1, %s3
  %s6 = scalar_select 0, %s5, %s3
  $region1: #{tpu_custom_call.1} parent=0
    #allocation2 [shape = 'u8[8192]{0}', space=vmem, size = 0x2000, scoped, tag = 'output window, operand 0, single buffered']
    #allocation3 [shape = 's32[1]{0}', space=sflag, size = 0x4, scoped, tag = 'scoped memory for tpu_custom_call.1']
    %7 = vsyncpa [#allocation3], 0
    // Predicated region
    $region2: #{tpu_custom_call.1} parent=1 // pred_check
      _
    $region3: #{tpu_custom_call.1} parent=1 // pred_check_branch
      %9 = sbr.rel (0) target = $region5
    $region4: #{tpu_custom_call.1} parent=1 // pred_region
      _
    $region5: #{tpu_custom_call.1} parent=1 // pred_fallthru
      _
    // Predicated region
    $region6: #{tpu_custom_call.1} parent=1 // pred_check
      _
    $region7: #{tpu_custom_call.1} parent=1 // pred_check_branch
      %11 = sbr.rel (0) target = $region9
    $region8: #{tpu_custom_call.1} parent=1 // pred_region
      _
    $region9: #{tpu_custom_call.1} parent=1 // pred_fallthru
      _
    %v12 = vld [vmem:[%s1] sm:$0xff]
    %v13 = vld [vmem:[%s1 + $0x8] sm:$0xff]
    %v14 = vld [vmem:[%s1 + $0x10] sm:$0xff]
    %v15 = vld [vmem:[%s1 + $0x18] sm:$0xff]
    %v16 = vld [vmem:[%s1 + $0x20] sm:$0xff]
    %v17 = vld [vmem:[%s1 + $0x28] sm:$0xff]
    %v18 = vld [vmem:[%s1 + $0x30] sm:$0xff]
    %v19 = vld [vmem:[%s1 + $0x38] sm:$0xff]
    %v20 = vld [vmem:[%s1 + $0x40] sm:$0xff]
    %v21 = vld [vmem:[%s0] sm:$0x1f]
    %23 = vset.pattern.permute.xlu0 32
    %24 = vperm.xlu0 %23, %v12
    %v25 = vpop.permute.xlu0 %24
    %vm27 = vcmask 39936
    %v28 = vsel %vm27, %v12, 0
    %vm30 = vcmask 1044480
    %v32 = vsel %vm30, %v21, 0
    %34 = vmatpush.msra.mxu0 0.0
    %35 = vmatpush.msra.mxu0 0.0
    %36 = vmatpush.msra.mxu0 0.0
    %37 = vmatpush.msra.mxu0 0.0
    %38 = vmatpush.msra.mxu0 0.0
    %39 = vmatpush.msra.mxu0 0.0
    %40 = vmatpush.msra.mxu0 0.0
    %41 = vmatpush.msra.mxu0 0.0
    %42 = vmatpush.msra.mxu0 0.0
    %43 = vmatpush.msra.mxu0 0.0
    %44 = vmatpush.msra.mxu0 0.0
    %45 = vmatpush.msra.mxu0 0.0
    %46 = vmatpush.msra.mxu0 0.0
    %47 = vmatpush.msra.mxu0 0.0
    %48 = vmatpush.msra.mxu0 0.0
    %49 = vmatpush.msra.mxu0 %v32
    %50 = vmatmul.f32.gmra.mxu0 %v28
    %v51 = vpop.f32.mrf.mxu0
    %v52 = vadd.f32 %v25, %v51
    %53 = vdwg.mxu0
    %v54 = vmax.f32 %v52, 0.0
    %56 = vset.pattern.permute.xlu0 32
    %57 = vperm.xlu0 %56, %v13
    %v58 = vpop.permute.xlu0 %57
    %61 = vset.pattern.permute.xlu0 32
    %62 = vperm.xlu0 %61, %v14
    %v63 = vpop.permute.xlu0 %62
    %vm65 = vcmask 64512
    %v66 = vsel %vm65, %v13, 0
    %v68 = vsel %vm65, %v14, 0
    %70 = vmatpush.msra.mxu0 0.0
    %71 = vmatpush.msra.mxu0 0.0
    %72 = vmatpush.msra.mxu0 0.0
    %73 = vmatpush.msra.mxu0 0.0
    %74 = vmatpush.msra.mxu0 0.0
    %75 = vmatpush.msra.mxu0 0.0
    %76 = vmatpush.msra.mxu0 0.0
    %77 = vmatpush.msra.mxu0 0.0
    %78 = vmatpush.msra.mxu0 0.0
    %79 = vmatpush.msra.mxu0 0.0
    %80 = vmatpush.msra.mxu0 0.0
    %81 = vmatpush.msra.mxu0 0.0
    %82 = vmatpush.msra.mxu0 0.0
    %83 = vmatpush.msra.mxu0 0.0
    %84 = vmatpush.msra.mxu0 0.0
    %85 = vmatpush.msra.mxu0 %v54
    %86 = vmatmul.f32.gmra.mxu0 %v66
    %v87 = vpop.f32.mrf.mxu0
    %v88 = vadd.f32 %v58, %v87
    %89 = vmatmul.f32.gmra.mxu0 %v68
    %v90 = vpop.f32.mrf.mxu0
    %v91 = vadd.f32 %v63, %v90
    %92 = vdwg.mxu0
    %v93 = vmax.f32 %v88, 0.0
    %v94 = vmax.f32 %v91, 0.0
    %96 = vset.pattern.permute.xlu0 32
    %97 = vperm.xlu0 %96, %v15
    %v98 = vpop.permute.xlu0 %97
    %101 = vset.pattern.permute.xlu0 32
    %102 = vperm.xlu0 %101, %v16
    %v103 = vpop.permute.xlu0 %102
    %106 = vset.pattern.permute.xlu0 32
    %107 = vperm.xlu0 %106, %v17
    %v108 = vpop.permute.xlu0 %107
    %111 = vset.pattern.permute.xlu0 32
    %112 = vperm.xlu0 %111, %v18
    %v113 = vpop.permute.xlu0 %112
    %vm115 = vcmask 130048
    %v116 = vsel %vm115, %v15, 0
    %v118 = vsel %vm115, %v16, 0
    %v120 = vsel %vm115, %v17, 0
    %v122 = vsel %vm115, %v18, 0
    %124 = vmatpush.msra.mxu0 0.0
    %125 = vmatpush.msra.mxu0 0.0
    %126 = vmatpush.msra.mxu0 0.0
    %127 = vmatpush.msra.mxu0 0.0
    %128 = vmatpush.msra.mxu0 0.0
    %129 = vmatpush.msra.mxu0 0.0
    %130 = vmatpush.msra.mxu0 0.0
    %131 = vmatpush.msra.mxu0 0.0
    %132 = vmatpush.msra.mxu0 0.0
    %133 = vmatpush.msra.mxu0 0.0
    %134 = vmatpush.msra.mxu0 0.0
    %135 = vmatpush.msra.mxu0 0.0
    %136 = vmatpush.msra.mxu0 0.0
    %137 = vmatpush.msra.mxu0 0.0
    %138 = vmatpush.msra.mxu0 %v94
    %139 = vmatpush.msra.mxu0 %v93
    %140 = vmatmul.f32.gmra.mxu0 %v116
    %v141 = vpop.f32.mrf.mxu0
    %v142 = vadd.f32 %v98, %v141
    %143 = vmatmul.f32.gmra.mxu0 %v118
    %v144 = vpop.f32.mrf.mxu0
    %v145 = vadd.f32 %v103, %v144
    %146 = vmatmul.f32.gmra.mxu0 %v120
    %v147 = vpop.f32.mrf.mxu0
    %v148 = vadd.f32 %v108, %v147
    %149 = vmatmul.f32.gmra.mxu0 %v122
    %v150 = vpop.f32.mrf.mxu0
    %v151 = vadd.f32 %v113, %v150
    %152 = vdwg.mxu0
    %v153 = vmax.f32 %v142, 0.0
    %v154 = vmax.f32 %v145, 0.0
    %v155 = vmax.f32 %v148, 0.0
    %v156 = vmax.f32 %v151, 0.0
    %158 = vset.pattern.permute.xlu0 32
    %159 = vperm.xlu0 %158, %v19
    %v160 = vpop.permute.xlu0 %159
    %163 = vset.pattern.permute.xlu0 32
    %164 = vperm.xlu0 %163, %v20
    %v165 = vpop.permute.xlu0 %164
    %vm167 = vcmask 261120
    %v168 = vsel %vm167, %v19, 0
    %v170 = vsel %vm167, %v20, 0
    %172 = vmatpush.msra.mxu0 0.0
    %173 = vmatpush.msra.mxu0 0.0
    %174 = vmatpush.msra.mxu0 0.0
    %175 = vmatpush.msra.mxu0 0.0
    %176 = vmatpush.msra.mxu0 0.0
    %177 = vmatpush.msra.mxu0 0.0
    %178 = vmatpush.msra.mxu0 0.0
    %179 = vmatpush.msra.mxu0 0.0
    %180 = vmatpush.msra.mxu0 0.0
    %181 = vmatpush.msra.mxu0 0.0
    %182 = vmatpush.msra.mxu0 0.0
    %183 = vmatpush.msra.mxu0 0.0
    %184 = vmatpush.msra.mxu0 %v156
    %185 = vmatpush.msra.mxu0 %v155
    %186 = vmatpush.msra.mxu0 %v154
    %187 = vmatpush.msra.mxu0 %v153
    %188 = vmatmul.f32.gmra.mxu0 %v168
    %v189 = vpop.f32.mrf.mxu0
    %v190 = vadd.f32 %v160, %v189
    %191 = vmatmul.f32.gmra.mxu0 %v170
    %v192 = vpop.f32.mrf.mxu0
    %v193 = vadd.f32 %v165, %v192
    %194 = vdwg.mxu0
    %v195 = vtanh.pop %v190
    %v196 = vtanh.pop %v193
    %197 = vst [vmem:[#allocation2] sm:$0xff] %v195
    %198 = vst [vmem:[#allocation2 + $0x8] sm:$0x3] %v196
    // Predicated region
    $region10: #{tpu_custom_call.1} parent=1 // pred_check
      _
    $region11: #{tpu_custom_call.1} parent=1 // pred_check_branch
      %200 = sbr.rel (0) target = $region13
    $region12: #{tpu_custom_call.1} parent=1 // pred_region
      %202 = vsyncadd [#allocation3], 0
      %s203 = sshll.u32 [#allocation2], 4
      %s204 = int_to_ptr.vmem [resolvable:$true] %s203
      %s205 = sshll.u32 %s2, 4
      %s206 = int_to_ptr.hbm [resolvable:$true] %s205
      %211 = dma.vmem_to_hbm [thread:$0]  %s204, 256, %s206, [#allocation3], 128, 128, 8
    $region13: #{tpu_custom_call.1} parent=1 // pred_fallthru
      _
    // Predicated region
    $region14: #{tpu_custom_call.1} parent=1 // pred_check
      _
    $region15: #{tpu_custom_call.1} parent=1 // pred_check_branch
      %213 = sbr.rel (0) target = $region17
    $region16: #{tpu_custom_call.1} parent=1 // pred_region
      %215 = dma.done [#allocation3], 256
    $region17: #{tpu_custom_call.1} parent=1 // pred_fallthru
      _
    %216 = vsyncpa [#allocation3], 1

</llo_original>
